<compile_context>
chip_gen: v5e
topology: v5e:2x2
jax: 0.10.0
libtpu: 0.0.40
codegen_flags: <defaults>
</compile_context>

<pallas_src>
import functools

import jax
import jax.numpy as jnp
from jax.experimental import pallas as pl
from jax.experimental.pallas import tpu as pltpu

# Hyper-parameters of FocalDiceLoss.__init__ (defaults). p_pos == p_neg == 2
# is hardcoded as plain squares below.
P_POS = 2
P_NEG = 2
CLIP_POS = 0.7
CLIP_NEG = 0.5
POS_WEIGHT = 0.3
REDUCTION = "mean"

_LANES = 128
_NUM_SUMS = 6  # [p_pos*t, p_pos^2, p_neg*(1-t), p_neg^2, t, t^2]


def _round_up(v, m):
    return -(-v // m) * m


def _focal_dice_kernel(x_ref, t_ref, o_ref, acc_ref, *, n_valid, tile_rows,
                       tiles_per_chunk, total_tiles, needs_mask):
    """Grid: (batch, chunk, feature_tile); axis 2 is the reduction axis.

    x_ref, t_ref : (1, tile_rows, 128) input blocks for (batch b, chunk c).
    o_ref        : (1, 1, 48, 128) per-(b, c) partial-sum output block.
    acc_ref      : (6, 8, 128) f32 VMEM scratch of lane-wide partial sums.
    """
    k = pl.program_id(2)
    c = pl.program_id(1)

    @pl.when(k == 0)
    def _():
        acc_ref[...] = jnp.zeros_like(acc_ref)

    x = x_ref[0].astype(jnp.float32)   # (tile_rows, 128)
    t = t_ref[0].astype(jnp.float32)

    pred = jax.nn.sigmoid(x)
    # positive branch: p_pos = clamp(pred + clip_pos, max=1) * pred
    p_pos = jnp.minimum(pred + CLIP_POS, 1.0) * pred
    # negative branch: p_neg = clamp((1-pred) + clip_neg, max=1) * (1-pred)
    xs_neg = 1.0 - pred
    p_neg = jnp.minimum(xs_neg + CLIP_NEG, 1.0) * xs_neg
    t_neg = 1.0 - t

    sums = (p_pos * t, p_pos * p_pos, p_neg * t_neg, p_neg * p_neg, t, t * t)

    def fold(v):
        # (tile_rows, 128) -> (8, 128) via pure VPU adds (vreg-aligned
        # regrouping); all cross-lane XLU reduction is deferred to the
        # wrapper, which works on the tiny partial-sum output.
        return jnp.sum(v.reshape(tile_rows // 8, 8, _LANES), axis=0)

    def accumulate(vals):
        for i, v in enumerate(vals):
            acc_ref[i] += fold(v)

    if needs_mask:
        tile_start = (c * tiles_per_chunk + k) * (tile_rows * _LANES)
        tile_end = tile_start + tile_rows * _LANES

        # Steady state: fully-valid tiles never pay for the mask.
        @pl.when(tile_end <= n_valid)
        def _():
            accumulate(sums)

        # Only the single ragged tile is masked.  jnp.where (not multiply):
        # OOB rows of a partial edge block hold undefined data.
        @pl.when(jnp.logical_and(tile_start < n_valid, tile_end > n_valid))
        def _():
            rid = jax.lax.broadcasted_iota(jnp.int32, (tile_rows, _LANES), 0)
            lid = jax.lax.broadcasted_iota(jnp.int32, (tile_rows, _LANES), 1)
            valid = (rid * _LANES + lid) < (n_valid - tile_start)
            accumulate([jnp.where(valid, v, 0.0) for v in sums])

        # Tiles entirely past n_valid (chunk over-coverage) contribute nothing.
    else:
        accumulate(sums)

    @pl.when(k == pl.num_programs(2) - 1)
    def _():
        # Full-width, lane-dense store of the chunk's partial sums.
        o_ref[0, 0] = acc_ref[...].reshape(_NUM_SUMS * 8, _LANES)


def _choose_tile_rows(rows, align, min_tiles):
    """Sublane-aligned tile height along the (rows, 128) feature layout.

    Always targets large blocks (~0.5-1 MiB f32 per input block) and relies
    on a ragged masked last tile instead of padding; double-buffered working
    set stays at a few MiB, well under every generation's VMEM.
    """
    cap = 2048                                   # 2048*128*4 B = 1 MiB (f32)
    if min_tiles > 1:
        # Keep >= min_tiles reduction tiles so the reduction can be split
        # across TensorCores when the batch alone can't fill them (v7x).
        cap = min(cap, _round_up(-(-rows // min_tiles), align))
    cap = max(cap, align)
    if rows <= cap:
        return _round_up(rows, align)
    return cap


@functools.partial(jax.jit, static_argnames=("reduction", "tile_rows"))
def focal_dice_loss(inp, target, *, reduction=REDUCTION, tile_rows=None):
    """inp, target: (B, C, H, W) (or any (B, ...)). Matches FocalDiceLoss."""
    assert inp.shape[0] == target.shape[0], \
        "predict & target batch size don't match"
    b = inp.shape[0]

    # Keep narrow float dtypes (bf16/f16) as-is — the kernel upcasts per tile
    # and halving input bytes is ~1:1 speedup on mem-bound v5e/v6e.
    def to_kernel_dtype(a):
        if jnp.issubdtype(a.dtype, jnp.floating):
            return a
        return a.astype(jnp.float32)

    x = to_kernel_dtype(inp).reshape(b, -1)     # row-major == torch .view(B,-1)
    t = to_kernel_dtype(target).reshape(b, -1)
    n = x.shape[1]

    rows = -(-n // _LANES)
    if rows * _LANES != n:
        # Only needed when N % 128 != 0 (lane alignment for the (rows, 128)
        # layout).  No padding at all for 128-aligned feature counts.
        # TODO(synk): a fully pad-free path for N % 128 != 0 would need sub-8
        # sublane blocks on a (B, N) layout; kept simple here.
        x = jnp.pad(x, ((0, 0), (0, rows * _LANES - n)))
        t = jnp.pad(t, ((0, 0), (0, rows * _LANES - n)))
    x3 = x.reshape(b, rows, _LANES)
    t3 = t.reshape(b, rows, _LANES)

    # Sublane multiple required by the narrowest input dtype (8/16/32 for
    # 4/2/1-byte elements).
    align = max(32 // x3.dtype.itemsize, 32 // t3.dtype.itemsize, 8)

    min_tiles = 2 if b < 2 else 1   # v7x has 2 TCs: split reduction if B == 1
    tr = tile_rows if tile_rows is not None else _choose_tile_rows(
        rows, align, min_tiles)
    tr = max(align, _round_up(tr, align))

    total_tiles = -(-rows // tr)
    num_chunks = min(min_tiles, total_tiles)
    kpc = -(-total_tiles // num_chunks)          # reduction tiles per chunk
    needs_mask = (num_chunks * kpc * tr * _LANES != n)

    kernel = functools.partial(
        _focal_dice_kernel, n_valid=n, tile_rows=tr, tiles_per_chunk=kpc,
        total_tiles=total_tiles, needs_mask=needs_mask)

    def in_map(i, c, k):
        # Clamp so chunk over-coverage never issues a fully-OOB block DMA;
        # such tiles contribute nothing (gated off inside the kernel).
        return (i, jnp.minimum(c * kpc + k, total_tiles - 1), 0)

    partial_sums = pl.pallas_call(
        kernel,
        out_shape=jax.ShapeDtypeStruct(
            (b, num_chunks, _NUM_SUMS * 8, _LANES), jnp.float32),
        grid_spec=pltpu.PrefetchScalarGridSpec(
            num_scalar_prefetch=0,
            grid=(b, num_chunks, kpc),
            in_specs=[
                pl.BlockSpec((1, tr, _LANES), in_map),
                pl.BlockSpec((1, tr, _LANES), in_map),
            ],
            out_specs=pl.BlockSpec((1, 1, _NUM_SUMS * 8, _LANES),
                                   lambda i, c, k: (i, c, 0, 0)),
            scratch_shapes=[pltpu.VMEM((_NUM_SUMS, 8, _LANES), jnp.float32)],
        ),
        compiler_params=pltpu.CompilerParams(
            # batch & chunk axes are independent (megacore-splittable); the
            # feature-tile axis is the accumulator/reduction axis (innermost).
            dimension_semantics=("parallel", "parallel", "arbitrary"),
            # Explicit budget (v5e default scoped VMEM is only 16 MiB); the
            # double-buffered working set is a few MiB at tr=2048.
            vmem_limit_bytes=32 * 1024 * 1024,
        ),
    )(x3, t3)

    # Tiny final reductions + per-row loss math in the wrapper.
    s = jnp.sum(partial_sums.reshape(b, num_chunks, _NUM_SUMS, 8, _LANES),
                axis=(1, 3, 4))                  # (B, 6)
    num_pos = s[:, 0]
    den_pos = s[:, 1] + s[:, 5]
    num_neg = s[:, 2]
    # sum((1-t)^2) == n - 2*sum(t) + sum(t^2) over the valid elements.
    den_neg = s[:, 3] + (jnp.float32(n) - 2.0 * s[:, 4] + s[:, 5])
    # NOTE: den_pos/den_neg == 0 yields inf/nan (parity with PyTorch ref).
    loss_pos = 1.0 - 2.0 * num_pos / den_pos
    loss_neg = 1.0 - 2.0 * num_neg / den_neg
    loss = loss_pos * POS_WEIGHT + loss_neg * (1.0 - POS_WEIGHT)

    if reduction == "mean":
        return jnp.mean(loss)
    elif reduction == "sum":
        return jnp.sum(loss)
    elif reduction == "none":
        return loss
    else:
        raise ValueError(f"Unexpected reduction {reduction}")


def _focal_dice_loss_ref(inp, target, reduction=REDUCTION):
    """Pure-JAX reference mirroring the PyTorch forward."""
    b = inp.shape[0]
    predict = jax.nn.sigmoid(inp).reshape(b, -1)
    t = target.reshape(b, -1).astype(jnp.float32)
    m_pos = jnp.minimum(predict + CLIP_POS, 1.0)
    p_pos = m_pos * predict
    num_pos = jnp.sum(p_pos * t, axis=1)
    den_pos = jnp.sum(p_pos ** P_POS + t ** P_POS, axis=1)
    xs_neg = 1.0 - predict
    m_neg = jnp.minimum(xs_neg + CLIP_NEG, 1.0)
    p_neg = m_neg * xs_neg
    num_neg = jnp.sum(p_neg * (1.0 - t), axis=1)
    den_neg = jnp.sum(p_neg ** P_NEG + (1.0 - t) ** P_NEG, axis=1)
    loss_pos = 1.0 - 2.0 * num_pos / den_pos
    loss_neg = 1.0 - 2.0 * num_neg / den_neg
    loss = loss_pos * POS_WEIGHT + loss_neg * (1.0 - POS_WEIGHT)
    if reduction == "mean":
        return jnp.mean(loss)
    elif reduction == "sum":
        return jnp.sum(loss)
    return loss


if __name__ == "__main__":
    key = jax.random.PRNGKey(0)
    ks = jax.random.split(key, 8)

    def check(x, t, tol=1e-5):
        got = jax.block_until_ready(focal_dice_loss(x, t))
        want = jax.block_until_ready(_focal_dice_loss_ref(
            x.astype(jnp.float32), t.astype(jnp.float32)))
        assert jnp.allclose(got, want, rtol=tol, atol=tol), (got, want)

    # 1) Aligned shape (N % 128 == 0): no padding, no mask, single tile.
    x1 = jax.random.normal(ks[0], (2, 4, 16, 16), dtype=jnp.float32)
    t1 = (jax.random.uniform(ks[1], (2, 4, 16, 16)) > 0.5).astype(jnp.float32)
    check(x1, t1)

    # 2) N % 128 != 0: small lane pad + ragged masked last tile.
    x2 = jax.random.normal(ks[2], (2, 3, 7, 11), dtype=jnp.float32)
    t2 = (jax.random.uniform(ks[3], (2, 3, 7, 11)) > 0.5).astype(jnp.float32)
    check(x2, t2)

    # 3) B == 1: reduction split across two parallel chunks (v7x both TCs).
    x3 = jax.random.normal(ks[4], (1, 8, 64, 64), dtype=jnp.float32)
    t3 = (jax.random.uniform(ks[5], (1, 8, 64, 64)) > 0.5).astype(jnp.float32)
    check(x3, t3)

    # 4) bf16 logits accepted without wrapper upcast (halves x HBM traffic).
    x4 = jax.random.normal(ks[6], (2, 4, 32, 32),
                           dtype=jnp.float32).astype(jnp.bfloat16)
    t4 = (jax.random.uniform(ks[7], (2, 4, 32, 32)) > 0.5).astype(jnp.float32)
    check(x4, t4)

    print("KERNEL_OK")
</pallas_src>

<mosaic_0001>
module attributes {stable_mosaic.version = 11 : i64} {
  func.func @_focal_dice_kernel(%arg0: i32, %arg1: i32, %arg2: i32, %arg3: memref<1x8x128xf32, #tpu.memory_space<vmem>>, %arg4: memref<1x8x128xf32, #tpu.memory_space<vmem>>, %arg5: memref<1x1x48x128xf32, #tpu.memory_space<vmem>>, %arg6: memref<6x8x128xf32, #tpu.memory_space<vmem>>) attributes {dimension_semantics = [#tpu.dimension_semantics<parallel>, #tpu.dimension_semantics<parallel>, #tpu.dimension_semantics<arbitrary>], iteration_bounds = array<i64: 2, 1, 1>, scalar_prefetch = 0 : i64, scratch_operands = 1 : i64, tpu.core_type = #tpu.core_type<tc>, window_params = [{transform_indices = @transform_0, window_bounds = array<i64: 1, 8, 128>}, {transform_indices = @transform_1, window_bounds = array<i64: 1, 8, 128>}, {transform_indices = @transform_2, window_bounds = array<i64: 1, 1, 48, 128>}]} {
    %c0_i32 = arith.constant 0 : i32
    %0 = arith.cmpi eq, %arg2, %c0_i32 : i32
    %1 = arith.extui %0 : i1 to i32
    %c0_i32_0 = arith.constant 0 : i32
    %2 = arith.cmpi ne, %1, %c0_i32_0 : i32
    scf.if %2 {
      %cst_51 = arith.constant 0.000000e+00 : f32
      %82 = vector.broadcast %cst_51 : f32 to vector<6x8x128xf32>
      %c0_52 = arith.constant 0 : index
      %c0_53 = arith.constant 0 : index
      %c0_54 = arith.constant 0 : index
      %83 = vector.load %arg6[%c0_52, %c0_53, %c0_54] : memref<6x8x128xf32, #tpu.memory_space<vmem>>, vector<6x8x128xf32>
      tpu.vector_store %arg6[%c0_52, %c0_53, %c0_54], %82 {strides = array<i32>} : memref<6x8x128xf32, #tpu.memory_space<vmem>>, vector<6x8x128xf32>,
    } else {
    }
    %c0 = arith.constant 0 : index
    %c0_1 = arith.constant 0 : index
    %c0_2 = arith.constant 0 : index
    %3 = vector.load %arg3[%c0, %c0_1, %c0_2] : memref<1x8x128xf32, #tpu.memory_space<vmem>>, vector<1x8x128xf32>
    %4 = vector.shape_cast %3 : vector<1x8x128xf32> to vector<8x128xf32>
    %c0_3 = arith.constant 0 : index
    %c0_4 = arith.constant 0 : index
    %c0_5 = arith.constant 0 : index
    %5 = vector.load %arg4[%c0_3, %c0_4, %c0_5] : memref<1x8x128xf32, #tpu.memory_space<vmem>>, vector<1x8x128xf32>
    %6 = vector.shape_cast %5 : vector<1x8x128xf32> to vector<8x128xf32>
    %7 = arith.negf %4 : vector<8x128xf32>
    %8 = math.exp %7 : vector<8x128xf32>
    %cst = arith.constant 1.000000e+00 : f32
    %9 = vector.broadcast %cst : f32 to vector<8x128xf32>
    %10 = arith.addf %9, %8 : vector<8x128xf32>
    %11 = arith.divf %9, %10 : vector<8x128xf32>
    %cst_6 = arith.constant 0.699999988 : f32
    %12 = vector.broadcast %cst_6 : f32 to vector<8x128xf32>
    %13 = arith.addf %11, %12 : vector<8x128xf32>
    %cst_7 = arith.constant 1.000000e+00 : f32
    %14 = vector.broadcast %cst_7 : f32 to vector<8x128xf32>
    %15 = arith.minimumf %13, %14 : vector<8x128xf32>
    %16 = arith.mulf %15, %11 : vector<8x128xf32>
    %cst_8 = arith.constant 1.000000e+00 : f32
    %17 = vector.broadcast %cst_8 : f32 to vector<8x128xf32>
    %18 = arith.subf %17, %11 : vector<8x128xf32>
    %cst_9 = arith.constant 5.000000e-01 : f32
    %19 = vector.broadcast %cst_9 : f32 to vector<8x128xf32>
    %20 = arith.addf %18, %19 : vector<8x128xf32>
    %cst_10 = arith.constant 1.000000e+00 : f32
    %21 = vector.broadcast %cst_10 : f32 to vector<8x128xf32>
    %22 = arith.minimumf %20, %21 : vector<8x128xf32>
    %23 = arith.mulf %22, %18 : vector<8x128xf32>
    %cst_11 = arith.constant 1.000000e+00 : f32
    %24 = vector.broadcast %cst_11 : f32 to vector<8x128xf32>
    %25 = arith.subf %24, %6 : vector<8x128xf32>
    %26 = arith.mulf %16, %6 : vector<8x128xf32>
    %27 = arith.mulf %16, %16 : vector<8x128xf32>
    %28 = arith.mulf %23, %25 : vector<8x128xf32>
    %29 = arith.mulf %23, %23 : vector<8x128xf32>
    %30 = arith.mulf %6, %6 : vector<8x128xf32>
    %c0_12 = arith.constant 0 : index
    %c0_13 = arith.constant 0 : index
    %c0_14 = arith.constant 0 : index
    %31 = vector.load %arg6[%c0_12, %c0_13, %c0_14] : memref<6x8x128xf32, #tpu.memory_space<vmem>>, vector<1x8x128xf32>
    %32 = vector.shape_cast %31 : vector<1x8x128xf32> to vector<8x128xf32>
    %33 = vector.shape_cast %26 : vector<8x128xf32> to vector<1x8x128xf32>
    %cst_15 = arith.constant dense<0.000000e+00> : vector<8x128xf32>
    %34 = vector.multi_reduction <add>, %33, %cst_15 [0] : vector<1x8x128xf32> to vector<8x128xf32>
    %35 = arith.addf %32, %34 : vector<8x128xf32>
    %c0_16 = arith.constant 0 : index
    %c0_17 = arith.constant 0 : index
    %c0_18 = arith.constant 0 : index
    %36 = vector.load %arg6[%c0_16, %c0_17, %c0_18] : memref<6x8x128xf32, #tpu.memory_space<vmem>>, vector<1x8x128xf32>
    %37 = vector.shape_cast %36 : vector<1x8x128xf32> to vector<8x128xf32>
    %38 = vector.shape_cast %35 : vector<8x128xf32> to vector<1x8x128xf32>
    tpu.vector_store %arg6[%c0_16, %c0_17, %c0_18], %38 {strides = array<i32>} : memref<6x8x128xf32, #tpu.memory_space<vmem>>, vector<1x8x128xf32>,
    %c1 = arith.constant 1 : index
    %c0_19 = arith.constant 0 : index
    %c0_20 = arith.constant 0 : index
    %39 = vector.load %arg6[%c1, %c0_19, %c0_20] : memref<6x8x128xf32, #tpu.memory_space<vmem>>, vector<1x8x128xf32>
    %40 = vector.shape_cast %39 : vector<1x8x128xf32> to vector<8x128xf32>
    %41 = vector.shape_cast %27 : vector<8x128xf32> to vector<1x8x128xf32>
    %cst_21 = arith.constant dense<0.000000e+00> : vector<8x128xf32>
    %42 = vector.multi_reduction <add>, %41, %cst_21 [0] : vector<1x8x128xf32> to vector<8x128xf32>
    %43 = arith.addf %40, %42 : vector<8x128xf32>
    %c1_22 = arith.constant 1 : index
    %c0_23 = arith.constant 0 : index
    %c0_24 = arith.constant 0 : index
    %44 = vector.load %arg6[%c1_22, %c0_23, %c0_24] : memref<6x8x128xf32, #tpu.memory_space<vmem>>, vector<1x8x128xf32>
    %45 = vector.shape_cast %44 : vector<1x8x128xf32> to vector<8x128xf32>
    %46 = vector.shape_cast %43 : vector<8x128xf32> to vector<1x8x128xf32>
    tpu.vector_store %arg6[%c1_22, %c0_23, %c0_24], %46 {strides = array<i32>} : memref<6x8x128xf32, #tpu.memory_space<vmem>>, vector<1x8x128xf32>,
    %c2 = arith.constant 2 : index
    %c0_25 = arith.constant 0 : index
    %c0_26 = arith.constant 0 : index
    %47 = vector.load %arg6[%c2, %c0_25, %c0_26] : memref<6x8x128xf32, #tpu.memory_space<vmem>>, vector<1x8x128xf32>
    %48 = vector.shape_cast %47 : vector<1x8x128xf32> to vector<8x128xf32>
    %49 = vector.shape_cast %28 : vector<8x128xf32> to vector<1x8x128xf32>
    %cst_27 = arith.constant dense<0.000000e+00> : vector<8x128xf32>
    %50 = vector.multi_reduction <add>, %49, %cst_27 [0] : vector<1x8x128xf32> to vector<8x128xf32>
    %51 = arith.addf %48, %50 : vector<8x128xf32>
    %c2_28 = arith.constant 2 : index
    %c0_29 = arith.constant 0 : index
    %c0_30 = arith.constant 0 : index
    %52 = vector.load %arg6[%c2_28, %c0_29, %c0_30] : memref<6x8x128xf32, #tpu.memory_space<vmem>>, vector<1x8x128xf32>
    %53 = vector.shape_cast %52 : vector<1x8x128xf32> to vector<8x128xf32>
    %54 = vector.shape_cast %51 : vector<8x128xf32> to vector<1x8x128xf32>
    tpu.vector_store %arg6[%c2_28, %c0_29, %c0_30], %54 {strides = array<i32>} : memref<6x8x128xf32, #tpu.memory_space<vmem>>, vector<1x8x128xf32>,
    %c3 = arith.constant 3 : index
    %c0_31 = arith.constant 0 : index
    %c0_32 = arith.constant 0 : index
    %55 = vector.load %arg6[%c3, %c0_31, %c0_32] : memref<6x8x128xf32, #tpu.memory_space<vmem>>, vector<1x8x128xf32>
    %56 = vector.shape_cast %55 : vector<1x8x128xf32> to vector<8x128xf32>
    %57 = vector.shape_cast %29 : vector<8x128xf32> to vector<1x8x128xf32>
    %cst_33 = arith.constant dense<0.000000e+00> : vector<8x128xf32>
    %58 = vector.multi_reduction <add>, %57, %cst_33 [0] : vector<1x8x128xf32> to vector<8x128xf32>
    %59 = arith.addf %56, %58 : vector<8x128xf32>
    %c3_34 = arith.constant 3 : index
    %c0_35 = arith.constant 0 : index
    %c0_36 = arith.constant 0 : index
    %60 = vector.load %arg6[%c3_34, %c0_35, %c0_36] : memref<6x8x128xf32, #tpu.memory_space<vmem>>, vector<1x8x128xf32>
    %61 = vector.shape_cast %60 : vector<1x8x128xf32> to vector<8x128xf32>
    %62 = vector.shape_cast %59 : vector<8x128xf32> to vector<1x8x128xf32>
    tpu.vector_store %arg6[%c3_34, %c0_35, %c0_36], %62 {strides = array<i32>} : memref<6x8x128xf32, #tpu.memory_space<vmem>>, vector<1x8x128xf32>,
    %c4 = arith.constant 4 : index
    %c0_37 = arith.constant 0 : index
    %c0_38 = arith.constant 0 : index
    %63 = vector.load %arg6[%c4, %c0_37, %c0_38] : memref<6x8x128xf32, #tpu.memory_space<vmem>>, vector<1x8x128xf32>
    %64 = vector.shape_cast %63 : vector<1x8x128xf32> to vector<8x128xf32>
    %65 = vector.shape_cast %6 : vector<8x128xf32> to vector<1x8x128xf32>
    %cst_39 = arith.constant dense<0.000000e+00> : vector<8x128xf32>
    %66 = vector.multi_reduction <add>, %65, %cst_39 [0] : vector<1x8x128xf32> to vector<8x128xf32>
    %67 = arith.addf %64, %66 : vector<8x128xf32>
    %c4_40 = arith.constant 4 : index
    %c0_41 = arith.constant 0 : index
    %c0_42 = arith.constant 0 : index
    %68 = vector.load %arg6[%c4_40, %c0_41, %c0_42] : memref<6x8x128xf32, #tpu.memory_space<vmem>>, vector<1x8x128xf32>
    %69 = vector.shape_cast %68 : vector<1x8x128xf32> to vector<8x128xf32>
    %70 = vector.shape_cast %67 : vector<8x128xf32> to vector<1x8x128xf32>
    tpu.vector_store %arg6[%c4_40, %c0_41, %c0_42], %70 {strides = array<i32>} : memref<6x8x128xf32, #tpu.memory_space<vmem>>, vector<1x8x128xf32>,
    %c5 = arith.constant 5 : index
    %c0_43 = arith.constant 0 : index
    %c0_44 = arith.constant 0 : index
    %71 = vector.load %arg6[%c5, %c0_43, %c0_44] : memref<6x8x128xf32, #tpu.memory_space<vmem>>, vector<1x8x128xf32>
    %72 = vector.shape_cast %71 : vector<1x8x128xf32> to vector<8x128xf32>
    %73 = vector.shape_cast %30 : vector<8x128xf32> to vector<1x8x128xf32>
    %cst_45 = arith.constant dense<0.000000e+00> : vector<8x128xf32>
    %74 = vector.multi_reduction <add>, %73, %cst_45 [0] : vector<1x8x128xf32> to vector<8x128xf32>
    %75 = arith.addf %72, %74 : vector<8x128xf32>
    %c5_46 = arith.constant 5 : index
    %c0_47 = arith.constant 0 : index
    %c0_48 = arith.constant 0 : index
    %76 = vector.load %arg6[%c5_46, %c0_47, %c0_48] : memref<6x8x128xf32, #tpu.memory_space<vmem>>, vector<1x8x128xf32>
    %77 = vector.shape_cast %76 : vector<1x8x128xf32> to vector<8x128xf32>
    %78 = vector.shape_cast %75 : vector<8x128xf32> to vector<1x8x128xf32>
    tpu.vector_store %arg6[%c5_46, %c0_47, %c0_48], %78 {strides = array<i32>} : memref<6x8x128xf32, #tpu.memory_space<vmem>>, vector<1x8x128xf32>,
    %c0_i32_49 = arith.constant 0 : i32
    %79 = arith.cmpi eq, %arg2, %c0_i32_49 : i32
    %80 = arith.extui %79 : i1 to i32
    %c0_i32_50 = arith.constant 0 : i32
    %81 = arith.cmpi ne, %80, %c0_i32_50 : i32
    scf.if %81 {
      %c0_51 = arith.constant 0 : index
      %c0_52 = arith.constant 0 : index
      %c0_53 = arith.constant 0 : index
      %82 = vector.load %arg6[%c0_51, %c0_52, %c0_53] : memref<6x8x128xf32, #tpu.memory_space<vmem>>, vector<6x8x128xf32>
      %83 = vector.shape_cast %82 : vector<6x8x128xf32> to vector<48x128xf32>
      %c0_54 = arith.constant 0 : index
      %c0_55 = arith.constant 0 : index
      %c0_56 = arith.constant 0 : index
      %c0_57 = arith.constant 0 : index
      %84 = vector.load %arg5[%c0_54, %c0_55, %c0_56, %c0_57] : memref<1x1x48x128xf32, #tpu.memory_space<vmem>>, vector<1x1x48x128xf32>
      %85 = vector.shape_cast %84 : vector<1x1x48x128xf32> to vector<48x128xf32>
      %86 = vector.shape_cast %83 : vector<48x128xf32> to vector<1x1x48x128xf32>
      tpu.vector_store %arg5[%c0_54, %c0_55, %c0_56, %c0_57], %86 {strides = array<i32>} : memref<1x1x48x128xf32, #tpu.memory_space<vmem>>, vector<1x1x48x128xf32>,
    } else {
    }
    return
  }
  func.func @transform_0(%arg0: i32, %arg1: i32, %arg2: i32) -> (i32, i32, i32) {
    %c1_i32 = arith.constant 1 : i32
    %0 = arith.muli %arg1, %c1_i32 : i32
    %1 = arith.addi %0, %arg2 : i32
    %c0_i32 = arith.constant 0 : i32
    %2 = arith.minsi %1, %c0_i32 : i32
    %c0_i32_0 = arith.constant 0 : i32
    %c0_i32_1 = arith.constant 0 : i32
    return %arg0, %2, %c0_i32_0 : i32, i32, i32
  }
  func.func @transform_1(%arg0: i32, %arg1: i32, %arg2: i32) -> (i32, i32, i32) {
    %c1_i32 = arith.constant 1 : i32
    %0 = arith.muli %arg1, %c1_i32 : i32
    %1 = arith.addi %0, %arg2 : i32
    %c0_i32 = arith.constant 0 : i32
    %2 = arith.minsi %1, %c0_i32 : i32
    %c0_i32_0 = arith.constant 0 : i32
    %c0_i32_1 = arith.constant 0 : i32
    return %arg0, %2, %c0_i32_0 : i32, i32, i32
  }
  func.func @transform_2(%arg0: i32, %arg1: i32, %arg2: i32) -> (i32, i32, i32, i32) {
    %c0_i32 = arith.constant 0 : i32
    %c0_i32_0 = arith.constant 0 : i32
    %c0_i32_1 = arith.constant 0 : i32
    return %arg0, %arg1, %c0_i32, %c0_i32_0 : i32, i32, i32, i32
  }
}

</mosaic_0001>

<llo_original>
// kernel: focal_dice_loss.1
$region0: #{focal_dice_loss.1}
  #allocation0 [shape = 'u32[]', space=smem, size = 0x4, offset = 0x4, fixed_abs, tag = 'smem constant byte address 0x4 - core index']
  #allocation1 [shape = 'u32[72,128]{1,0:T(1,128)}', space=vmem, size = 0x9000, scoped, tag = 'internal scratch']
  #allocation2 [shape = 'f32[6,8,128]{2,1,0:T(8,128)}', space=vmem, size = 0x6000, scoped, tag = 'scratch operand']
  %s0 = inlined_call_operand.vmem [shape: f32[2,8,128], index: 0, kind: input, shape index: {}]
  %s1 = inlined_call_operand.vmem [shape: f32[2,8,128], index: 1, kind: input, shape index: {}]
  %s2 = inlined_call_operand.vmem [shape: f32[2,1,48,128], index: 2, kind: output, shape index: {}]
  %s3 = sld [smem:[#allocation0]]
  $region49: #{focal_dice_loss.1} parent=0
    _
  %s5 = ssub.s32 1, %s3
  %s6 = scalar_select 0, %s5, %s3
  loop: start=0, step=1, limit=4
  $region2: #{focal_dice_loss.1} parent=0 // loop_pre_header
    _
  $region3: #{focal_dice_loss.1} parent=0 // loop_header
    %s8 = sphi 0, %s12
    %p9 = scmp.ge.s32.totalorder %s8, 4
    %s15 = sphi 0, %s34
    %s16 = sphi 0, %s30
    %s17 = sphi 0, %s26
    %s18 = sphi 0, %s15
    %s19 = sphi 0, %s16
    %s20 = sphi 0, %s17
    %s21 = sphi 0, %s18
    %s22 = sphi 0, %s19
    %s23 = sphi 0, %s20
    %s45 = sphi 0, %s47
    %s48 = sphi 0, %s45
    %s49 = sphi 0, %s48
    %s65 = sphi 0, %s49
    %s79 = sphi 0, %s81
    %s82 = sphi 0, %s79
    %s83 = sphi 0, %s82
    %s99 = sphi 0, %s83
    %s107 = sphi 0, %s109
    %s110 = sphi 0, %s107
    %s111 = sphi 0, %s110
    %s127 = sphi 0, %s111
  $region4: #{focal_dice_loss.1} parent=0 // loop_header_branch
    %11 = sbr.rel (%p9) target = $region8
  $region5: #{focal_dice_loss.1} parent=0 // loop_body
    %s13 = ssub.s32 %s8, 1
    %s14 = ssub.s32 %s8, 2
    %s24 = sadd.s32 1, %s17
    %p25 = scmp.ge.s32.totalorder %s24, 1
    %s26 = scalar_select %p25, 0, %s24
    %s27 = sadd.s32 1, %s16
    %s28 = scalar_select %p25, %s27, %s16
    %p29 = scmp.ge.s32.totalorder %s28, 1
    %s30 = scalar_select %p29, 0, %s28
    %s31 = sadd.s32 1, %s15
    %s32 = scalar_select %p29, %s31, %s15
    %p33 = scmp.ge.s32.totalorder %s32, 2
    %s34 = scalar_select %p33, 0, %s32
    %s35 = sadd.s32 %s16, %s17
    %p36 = scmp.lt.s32.totalorder %s35, 0
    %s37 = scalar_select %p36, %s35, 0
    %s38 = sadd.s32 %s30, %s26
    %p39 = scmp.lt.s32.totalorder %s38, 0
    %s40 = scalar_select %p39, %s38, 0
    %s41 = ssub.s32 %s15, %s34
    %s42 = ssub.s32 %s37, %s40
    %s43 = sor.u32 %s41, %s42
    %p44 = scmp.eq.s32.totalorder %s43, 0
    %s46 = sadd.s32 %s45, 1
    %s47 = scalar_select %p44, %s45, %s46
    %p50 = pneg %p44
    %p51 = scmp.eq.s32.totalorder %s8, 1
    %p52 = por %p50, %p51
    %p53 = scmp.ne.s32.totalorder %s45, %s48
    %p54 = scmp.eq.s32.totalorder %s8, 0
    %p55 = por %p53, %p54
    %p56 = scmp.ne.s32.totalorder %s45, %s48
    %p57 = scmp.eq.s32.totalorder %s13, 1
    %p58 = por %p56, %p57
    %p59 = scmp.ne.s32.totalorder %s48, %s49
    %p60 = scmp.eq.s32.totalorder %s13, 0
    %p61 = por %p59, %p60
    %p62 = scmp.ne.s32.totalorder %s48, %s49
    %p63 = scmp.eq.s32.totalorder %s14, 1
    %p64 = por %p62, %p63
    %p66 = scmp.ne.s32.totalorder %s49, %s65
    %p67 = scmp.eq.s32.totalorder %s14, 0
    %p68 = por %p66, %p67
    %s69 = sadd.s32 %s16, %s17
    %p70 = scmp.lt.s32.totalorder %s69, 0
    %s71 = scalar_select %p70, %s69, 0
    %s72 = sadd.s32 %s30, %s26
    %p73 = scmp.lt.s32.totalorder %s72, 0
    %s74 = scalar_select %p73, %s72, 0
    %s75 = ssub.s32 %s15, %s34
    %s76 = ssub.s32 %s71, %s74
    %s77 = sor.u32 %s75, %s76
    %p78 = scmp.eq.s32.totalorder %s77, 0
    %s80 = sadd.s32 %s79, 1
    %s81 = scalar_select %p78, %s79, %s80
    %p84 = pneg %p78
    %p85 = scmp.eq.s32.totalorder %s8, 1
    %p86 = por %p84, %p85
    %p87 = scmp.ne.s32.totalorder %s79, %s82
    %p88 = scmp.eq.s32.totalorder %s8, 0
    %p89 = por %p87, %p88
    %p90 = scmp.ne.s32.totalorder %s79, %s82
    %p91 = scmp.eq.s32.totalorder %s13, 1
    %p92 = por %p90, %p91
    %p93 = scmp.ne.s32.totalorder %s82, %s83
    %p94 = scmp.eq.s32.totalorder %s13, 0
    %p95 = por %p93, %p94
    %p96 = scmp.ne.s32.totalorder %s82, %s83
    %p97 = scmp.eq.s32.totalorder %s14, 1
    %p98 = por %p96, %p97
    %p100 = scmp.ne.s32.totalorder %s83, %s99
    %p101 = scmp.eq.s32.totalorder %s14, 0
    %p102 = por %p100, %p101
    %s103 = ssub.s32 %s15, %s34
    %s104 = ssub.s32 %s16, %s30
    %s105 = sor.u32 %s103, %s104
    %p106 = scmp.eq.s32.totalorder %s105, 0
    %s108 = sadd.s32 %s107, 1
    %s109 = scalar_select %p106, %s107, %s108
    %p112 = pneg %p106
    %p113 = scmp.eq.s32.totalorder %s8, 1
    %p114 = por %p112, %p113
    %p115 = scmp.ne.s32.totalorder %s107, %s110
    %p116 = scmp.eq.s32.totalorder %s8, 0
    %p117 = por %p115, %p116
    %p118 = scmp.ne.s32.totalorder %s107, %s110
    %p119 = scmp.eq.s32.totalorder %s13, 1
    %p120 = por %p118, %p119
    %p121 = scmp.ne.s32.totalorder %s110, %s111
    %p122 = scmp.eq.s32.totalorder %s13, 0
    %p123 = por %p121, %p122
    %p124 = scmp.ne.s32.totalorder %s110, %s111
    %p125 = scmp.eq.s32.totalorder %s14, 1
    %p126 = por %p124, %p125
    %p128 = scmp.ne.s32.totalorder %s111, %s127
    %p129 = scmp.eq.s32.totalorder %s14, 0
    %p130 = por %p128, %p129
    %p131 = scmp.le.s32.totalorder 1, %s8
    %p132 = scmp.lt.s32.totalorder %s8, 3
    %p133 = pnand %p131, %p132
    %p134 = pneg %p133
    // Predicated region
    $region9: #{focal_dice_loss.1} parent=5 // pred_check
      _
    $region10: #{focal_dice_loss.1} parent=5 // pred_check_branch
      %136 = sbr.rel (%p133) target = $region12
    $region11: #{focal_dice_loss.1} parent=5 // pred_region
      %s137 = ssub.s32 %s8, 1
    $region12: #{focal_dice_loss.1} parent=5 // pred_fallthru
      _
    %p138 = scmp.lt.s32.totalorder %s8, 2
    // Predicated region
    $region13: #{focal_dice_loss.1} parent=5 // pred_check
      %p139 = pneg %p138
    $region14: #{focal_dice_loss.1} parent=5 // pred_check_branch
      %141 = sbr.rel (%p139) target = $region16
    $region15: #{focal_dice_loss.1} parent=5 // pred_region
      // Predicated region
      $region17: #{focal_dice_loss.1} parent=15 // pred_check
        %p142 = pneg %p55
      $region18: #{focal_dice_loss.1} parent=15 // pred_check_branch
        %144 = sbr.rel (%p142) target = $region20
      $region19: #{focal_dice_loss.1} parent=15 // pred_region
        %s145 = sadd.s32 %s16, %s17
        %p146 = scmp.lt.s32.totalorder %s145, 0
        %s147 = scalar_select %p146, %s145, 0
        %p148 = scmp.lt.s32.totalorder %s15, 1
        %s149 = scalar_select %p148, %s15, 1
        %p150 = scmp.lt.s32.totalorder %s147, 0
        %s151 = scalar_select %p150, %s147, 0
        %s152 = sadd.s32 %s151, %s149
        %s153 = smul.addr %s152, 8
        %s154 = scalar_lea.vmem %s0, %s153
        %s155 = sadd.s32 %s16, %s17
        %p156 = scmp.lt.s32.totalorder %s155, 0
        %s157 = scalar_select %p156, %s155, 0
      $region20: #{focal_dice_loss.1} parent=15 // pred_fallthru
        _
      // Predicated region
      $region21: #{focal_dice_loss.1} parent=15 // pred_check
        %p158 = pneg %p89
      $region22: #{focal_dice_loss.1} parent=15 // pred_check_branch
        %160 = sbr.rel (%p158) target = $region24
      $region23: #{focal_dice_loss.1} parent=15 // pred_region
        %s161 = sadd.s32 %s16, %s17
        %p162 = scmp.lt.s32.totalorder %s161, 0
        %s163 = scalar_select %p162, %s161, 0
        %p164 = scmp.lt.s32.totalorder %s15, 1
        %s165 = scalar_select %p164, %s15, 1
        %p166 = scmp.lt.s32.totalorder %s163, 0
        %s167 = scalar_select %p166, %s163, 0
        %s168 = sadd.s32 %s167, %s165
        %s169 = smul.addr %s168, 8
        %s170 = scalar_lea.vmem %s1, %s169
        %s171 = sadd.s32 %s16, %s17
        %p172 = scmp.lt.s32.totalorder %s171, 0
        %s173 = scalar_select %p172, %s171, 0
      $region24: #{focal_dice_loss.1} parent=15 // pred_fallthru
        _
    $region16: #{focal_dice_loss.1} parent=5 // pred_fallthru
      _
    %p174 = scmp.le.s32.totalorder 1, %s8
    %p175 = scmp.lt.s32.totalorder %s8, 3
    %p176 = pnand %p174, %p175
    %p177 = pneg %p176
    // Predicated region
    $region25: #{focal_dice_loss.1} parent=5 // pred_check
      _
    $region26: #{focal_dice_loss.1} parent=5 // pred_check_branch
      %179 = sbr.rel (%p176) target = $region28
    $region27: #{focal_dice_loss.1} parent=5 // pred_region
      %s180 = ssub.s32 %s8, 1
      %s181 = sadd.s32 %s19, %s20
      %p182 = scmp.lt.s32.totalorder %s181, 0
      %s183 = scalar_select %p182, %s181, 0
      %p184 = scmp.lt.s32.totalorder %s18, 1
      %s185 = scalar_select %p184, %s18, 1
      %p186 = scmp.lt.s32.totalorder %s183, 0
      %s187 = scalar_select %p186, %s183, 0
      %s188 = sadd.s32 %s187, %s185
      %s189 = smul.addr %s188, 8
      %s190 = scalar_lea.vmem %s0, %s189
      %p191 = pneg %p61
      %p192 = pneg %p58
      %s193 = sadd.s32 %s19, %s20
      %p194 = scmp.lt.s32.totalorder %s193, 0
      %s195 = scalar_select %p194, %s193, 0
      %p196 = scmp.lt.s32.totalorder %s18, 1
      %s197 = scalar_select %p196, %s18, 1
      %p198 = scmp.lt.s32.totalorder %s195, 0
      %s199 = scalar_select %p198, %s195, 0
      %s200 = sadd.s32 %s199, %s197
      %s201 = smul.addr %s200, 8
      %s202 = scalar_lea.vmem %s1, %s201
      %p203 = pneg %p95
      %p204 = pneg %p92
      %p205 = pneg %p123
      %p206 = pneg %p120
      %p207 = scmp.lt.s32.totalorder %s18, 1
      %s208 = scalar_select %p207, %s18, 1
      %p209 = scmp.lt.s32.totalorder %s19, 0
      %s210 = scalar_select %p209, %s19, 0
      %s211 = smul.addr %s210, 6
      %s212 = smul.addr %s208, 6
      %s213 = sadd.s32 %s211, %s212
      %s214 = smul.addr %s213, 8
      %s215 = scalar_lea.vmem %s2, %s214
      %s216 = sadd.s32 %s19, %s20
      %p217 = scmp.lt.s32.totalorder %s216, 0
      %s218 = scalar_select %p217, %s216, 0
      %p219 = scmp.lt.s32.totalorder %s18, 1
      %s220 = scalar_select %p219, %s18, 1
      %p221 = scmp.lt.s32.totalorder %s218, 0
      %s222 = scalar_select %p221, %s218, 0
      %s223 = sadd.s32 %s222, %s220
      %s224 = smul.addr %s223, 8
      %s225 = scalar_lea.vmem %s0, %s224
      %s226 = sadd.s32 %s19, %s20
      %p227 = scmp.lt.s32.totalorder %s226, 0
      %s228 = scalar_select %p227, %s226, 0
      %s229 = sadd.s32 %s19, %s20
      %p230 = scmp.lt.s32.totalorder %s229, 0
      %s231 = scalar_select %p230, %s229, 0
      %p232 = scmp.lt.s32.totalorder %s18, 1
      %s233 = scalar_select %p232, %s18, 1
      %p234 = scmp.lt.s32.totalorder %s231, 0
      %s235 = scalar_select %p234, %s231, 0
      %s236 = sadd.s32 %s235, %s233
      %s237 = smul.addr %s236, 8
      %s238 = scalar_lea.vmem %s1, %s237
      %s239 = sadd.s32 %s19, %s20
      %p240 = scmp.lt.s32.totalorder %s239, 0
      %s241 = scalar_select %p240, %s239, 0
      %p242 = scmp.lt.s32.totalorder %s18, 1
      %s243 = scalar_select %p242, %s18, 1
      %p244 = scmp.lt.s32.totalorder %s19, 0
      %s245 = scalar_select %p244, %s19, 0
      %s246 = smul.addr %s245, 6
      %s247 = smul.addr %s243, 6
      %s248 = sadd.s32 %s246, %s247
      %s249 = smul.addr %s248, 8
      %s250 = scalar_lea.vmem %s2, %s249
      %p251 = scmp.eq.s32.totalorder %s20, 0
      // Predicated region
      $region29: #{focal_dice_loss.1} parent=27 // pred_check
        %p252 = pneg %p251
      $region30: #{focal_dice_loss.1} parent=27 // pred_check_branch
        %254 = sbr.rel (%p252) target = $region32
      $region31: #{focal_dice_loss.1} parent=27 // pred_region
        %255 = vst [vmem:[#allocation2] sm:$0xff] 0.0
        %256 = vst [vmem:[#allocation2 + $0x8] sm:$0xff] 0.0
        %257 = vst [vmem:[#allocation2 + $0x10] sm:$0xff] 0.0
        %258 = vst [vmem:[#allocation2 + $0x18] sm:$0xff] 0.0
        %259 = vst [vmem:[#allocation2 + $0x20] sm:$0xff] 0.0
        %260 = vst [vmem:[#allocation2 + $0x28] sm:$0xff] 0.0
      $region32: #{focal_dice_loss.1} parent=27 // pred_fallthru
        _
      %v261 = vld [vmem:[%s225] sm:$0xff]
      %v262 = vld [vmem:[%s238] sm:$0xff]
      %v263 = vxor.u32 %v261, 2147483648
      %v264 = vmul.f32 %v263, 1.442695
      %v265 = vpow.pop %v264
      %v266 = vadd.f32 %v265, 1.0
      %v267 = vrcp.pop %v266
      %v268 = vmul.f32 %v266, %v267
      %v269 = vsub.f32 1.0, %v268
      %v270 = vmul.f32 %v267, %v269
      %v271 = vadd.f32 %v267, %v270
      %vm272 = vweird.f32 %v266
      %vm273 = vweird.f32 %v267
      %vm274 = vmor %vm272, %vm273
      %v275 = vsel %vm274, %v267, %v271
      %v276 = vand.u32 2147483647, %v266
      %vm277 = vcmp.eq.f32.partialorder %v276, 8.507059e+37
      %v278 = vand.u32 %v266, 2147483648
      %v279 = vor.u32 1.1754944e-38, %v278
      %v280 = vsel %vm277, %v279, %v275
      %v281 = vmul.f32 1.0, %v280
      %v282 = vadd.f32 %v281, 0.7
      %v283 = vmin.f32 %v282, 1.0
      %v284 = vmul.f32 %v283, %v281
      %v285 = vsub.f32 1.0, %v281
      %v286 = vadd.f32 %v285, 0.5
      %v287 = vmin.f32 %v286, 1.0
      %v288 = vmul.f32 %v287, %v285
      %v289 = vsub.f32 1.0, %v262
      %v290 = vmul.f32 %v284, %v262
      %v291 = vmul.f32 %v284, %v284
      %v292 = vmul.f32 %v288, %v289
      %v293 = vmul.f32 %v288, %v288
      %v294 = vmul.f32 %v262, %v262
      %v295 = vld [vmem:[#allocation2] sm:$0xff]
      %v296 = vadd.f32 %v290, 0.0
      %v297 = vadd.f32 %v295, %v296
      %298 = vst [vmem:[#allocation2] sm:$0xff] %v297
      %s299 = scalar_lea.vmem [#allocation2], 8
      %v300 = vld [vmem:[%s299] sm:$0xff]
      %v301 = vadd.f32 %v291, 0.0
      %v302 = vadd.f32 %v300, %v301
      %303 = vst [vmem:[%s299] sm:$0xff] %v302
      %s304 = scalar_lea.vmem [#allocation2], 16
      %v305 = vld [vmem:[%s304] sm:$0xff]
      %v306 = vadd.f32 %v292, 0.0
      %v307 = vadd.f32 %v305, %v306
      %308 = vst [vmem:[%s304] sm:$0xff] %v307
      %s309 = scalar_lea.vmem [#allocation2], 24
      %v310 = vld [vmem:[%s309] sm:$0xff]
      %v311 = vadd.f32 %v293, 0.0
      %v312 = vadd.f32 %v310, %v311
      %313 = vst [vmem:[%s309] sm:$0xff] %v312
      %s314 = scalar_lea.vmem [#allocation2], 32
      %v315 = vld [vmem:[%s314] sm:$0xff]
      %v316 = vadd.f32 %v262, 0.0
      %v317 = vadd.f32 %v315, %v316
      %318 = vst [vmem:[%s314] sm:$0xff] %v317
      %s319 = scalar_lea.vmem [#allocation2], 40
      %v320 = vld [vmem:[%s319] sm:$0xff]
      %v321 = vadd.f32 %v294, 0.0
      %v322 = vadd.f32 %v320, %v321
      %323 = vst [vmem:[%s319] sm:$0xff] %v322
      // Predicated region
      $region33: #{focal_dice_loss.1} parent=27 // pred_check
        %p324 = pneg %p251
      $region34: #{focal_dice_loss.1} parent=27 // pred_check_branch
        %326 = sbr.rel (%p324) target = $region36
      $region35: #{focal_dice_loss.1} parent=27 // pred_region
        %v327 = vld [vmem:[#allocation2] sm:$0xff]
        %v328 = vld [vmem:[#allocation2 + $0x8] sm:$0xff]
        %v329 = vld [vmem:[#allocation2 + $0x10] sm:$0xff]
        %v330 = vld [vmem:[#allocation2 + $0x18] sm:$0xff]
        %v331 = vld [vmem:[#allocation2 + $0x20] sm:$0xff]
        %v332 = vld [vmem:[#allocation2 + $0x28] sm:$0xff]
        %333 = vst [vmem:[%s250] sm:$0xff] %v327
        %334 = vst [vmem:[%s250 + $0x8] sm:$0xff] %v328
        %335 = vst [vmem:[%s250 + $0x10] sm:$0xff] %v329
        %336 = vst [vmem:[%s250 + $0x18] sm:$0xff] %v330
        %337 = vst [vmem:[%s250 + $0x20] sm:$0xff] %v331
        %338 = vst [vmem:[%s250 + $0x28] sm:$0xff] %v332
      $region36: #{focal_dice_loss.1} parent=27 // pred_fallthru
        _
      %p339 = scmp.lt.s32.totalorder %s18, 1
      %s340 = scalar_select %p339, %s18, 1
      %p341 = scmp.lt.s32.totalorder %s19, 0
      %s342 = scalar_select %p341, %s19, 0
      %s343 = smul.addr %s342, 6
      %s344 = smul.addr %s340, 6
      %s345 = sadd.s32 %s343, %s344
      %s346 = smul.addr %s345, 8
      %s347 = scalar_lea.vmem %s2, %s346
      // Predicated region
      $region37: #{focal_dice_loss.1} parent=27 // pred_check
        %p348 = pneg %p120
      $region38: #{focal_dice_loss.1} parent=27 // pred_check_branch
        %350 = sbr.rel (%p348) target = $region40
      $region39: #{focal_dice_loss.1} parent=27 // pred_region
        _
      $region40: #{focal_dice_loss.1} parent=27 // pred_fallthru
        _
    $region28: #{focal_dice_loss.1} parent=5 // pred_fallthru
      _
    %p351 = scmp.le.s32.totalorder 2, %s8
    // Predicated region
    $region41: #{focal_dice_loss.1} parent=5 // pred_check
      %p352 = pneg %p351
    $region42: #{focal_dice_loss.1} parent=5 // pred_check_branch
      %354 = sbr.rel (%p352) target = $region44
    $region43: #{focal_dice_loss.1} parent=5 // pred_region
      %s355 = ssub.s32 %s8, 2
      // Predicated region
      $region45: #{focal_dice_loss.1} parent=43 // pred_check
        %p356 = pneg %p126
      $region46: #{focal_dice_loss.1} parent=43 // pred_check_branch
        %358 = sbr.rel (%p356) target = $region48
      $region47: #{focal_dice_loss.1} parent=43 // pred_region
        %p359 = scmp.lt.s32.totalorder %s21, 1
        %s360 = scalar_select %p359, %s21, 1
        %p361 = scmp.lt.s32.totalorder %s22, 0
        %s362 = scalar_select %p361, %s22, 0
        %s363 = smul.addr %s362, 6
        %s364 = smul.addr %s360, 6
        %s365 = sadd.s32 %s363, %s364
        %s366 = smul.addr %s365, 8
        %s367 = scalar_lea.vmem %s2, %s366
      $region48: #{focal_dice_loss.1} parent=43 // pred_fallthru
        _
    $region44: #{focal_dice_loss.1} parent=5 // pred_fallthru
      _
  $region6: #{focal_dice_loss.1} parent=0 // loop_footer
    %s12 = sadd.s32 1, %s8
  $region7: #{focal_dice_loss.1} parent=0 // loop_footer_branch
    %7 = sbr.rel target = $region3
  $region8: #{focal_dice_loss.1} parent=0 // loop_exit
    _

</llo_original>
